<compile_context>
chip_gen: v6e
topology: v6e:2x2x1
jax: 0.10.0
libtpu: 0.0.40
codegen_flags: <defaults>
</compile_context>

<pallas_src>
import functools

import jax
import jax.numpy as jnp
from jax.experimental import pallas as pl
from jax.experimental.pallas import tpu as pltpu

LN_EPS = 1e-5


def _cdiv(a, b):
    return -(-a // b)


def _round_up(x, m):
    return ((x + m - 1) // m) * m


def _lane(n):
    return _round_up(max(int(n), 1), 128)


def _sub(n):
    return _round_up(max(int(n), 1), 8)


def _bspec(shape, index_map, n_buf=None):
    """BlockSpec with an optional explicit buffer count (falls back cleanly if the
    installed jax has no pipeline_mode/Buffered)."""
    if n_buf is None:
        return pl.BlockSpec(shape, index_map)
    try:
        return pl.BlockSpec(shape, index_map, pipeline_mode=pl.Buffered(n_buf))
    except Exception:
        return pl.BlockSpec(shape, index_map)


# --------------------------------------------------------------------------------------
# Kernels
# --------------------------------------------------------------------------------------
def _epilogue(h, vecs_ref, scal_ref, orig_ref, o_ref):
    # act() == ReLU
    h = jnp.maximum(h, 0.0)
    # LayerNorm statistics (centered two-pass variance for stability).
    mean = jnp.mean(h, axis=-1, keepdims=True)
    c = h - mean
    var = jnp.mean(c * c, axis=-1, keepdims=True)
    rstd = jax.lax.rsqrt(var + LN_EPS)
    # Fused LayerNorm affine + Linear(width -> 1):
    #   sum(((h - mean) * rstd * gamma + beta) * w2) + b2
    # = rstd * sum((h - mean) * (gamma * w2)) + (sum(beta * w2) + b2)
    proj = rstd * jnp.sum(c * vecs_ref[1:2, :], axis=-1, keepdims=True) + scal_ref[0]
    # Dropout (eval) and DeQuantStub are identities.
    o_ref[...] = (orig_ref[...].astype(jnp.float32) + proj).astype(o_ref.dtype)


def _reg_out_kernel(x_ref, w1_ref, vecs_ref, scal_ref, orig_ref, o_ref):
    # Linear(embed_dim -> width) on the MXU, f32 accumulation, operands in native dtype.
    h = jnp.dot(x_ref[...], w1_ref[...], preferred_element_type=jnp.float32)
    h = h + vecs_ref[0:1, :]          # b1
    _epilogue(h, vecs_ref, scal_ref, orig_ref, o_ref)


def _reg_out_kernel_ksplit(x_ref, w1_ref, vecs_ref, scal_ref, orig_ref, o_ref, h_acc):
    k = pl.program_id(1)

    @pl.when(k == 0)
    def _():
        h_acc[...] = jnp.zeros_like(h_acc)

    h_acc[...] += jnp.dot(x_ref[...], w1_ref[...], preferred_element_type=jnp.float32)

    @pl.when(k == pl.num_programs(1) - 1)
    def _():
        h = h_acc[...] + vecs_ref[0:1, :]   # b1
        _epilogue(h, vecs_ref, scal_ref, orig_ref, o_ref)


# --------------------------------------------------------------------------------------
# VMEM-aware tiling
# --------------------------------------------------------------------------------------
def _footprint_bytes(tm, tk, W, xbytes, wbytes, obytes, w1_bufs, ksplit):
    b = 2 * _sub(tm) * _lane(tk) * xbytes              # x tiles (double buffered)
    b += w1_bufs * _sub(tk) * _lane(W) * wbytes        # w1 buffers
    b += _sub(2) * _lane(W) * 4                        # stacked (2, W) row vectors
    b += 2 * 2 * _sub(tm) * _lane(1) * obytes          # orig + out tiles (lane padded)
    b += (3 + (1 if ksplit else 0)) * _sub(tm) * _lane(W) * 4  # h/c temps (+ acc scratch)
    return b


def _tm_candidates(cap):
    cands, t = [], cap
    while t >= 8:
        if t not in cands:
            cands.append(t)
        if t > 256:
            t = max(256, _round_up(t - 256, 8))
        else:
            t = ((t // 2) // 8) * 8
    return cands


def _select_tiling(M, E, W, xbytes, wbytes, obytes, budget, tm_req, ek_tile):
    tm_cap = max(8, min(_round_up(M, 8), _round_up(tm_req, 8)))

    def largest_tm(tk, w1_bufs, ksplit):
        for t in _tm_candidates(tm_cap):
            if _footprint_bytes(t, tk, W, xbytes, wbytes, obytes, w1_bufs, ksplit) <= budget:
                return t
        return None

    # Forced K tile (testing / explicit override).
    if (ek_tile is not None and 0 < ek_tile < E
            and E % ek_tile == 0 and ek_tile % 128 == 0):
        return (largest_tm(ek_tile, 2, True) or 8), ek_tile, True

    # Path 1 (default): full-E matmul, w1 resident with a single buffer.
    t = largest_tm(E, 1, False)
    if t is not None:
        return t, E, False

    # Path 2 (huge E*W, mainly v7x 64 MiB): split the reduction axis over a K grid dim.
    for n_k in range(2, 65):
        if E % n_k:
            continue
        tk = E // n_k
        if tk % 128:
            continue
        t = largest_tm(tk, 2, True)
        if t is not None:
            return t, tk, True

    # Last resort: smallest row tile, no split (vmem_limit stretches to cover it).
    return 8, E, False


# --------------------------------------------------------------------------------------
# Wrapper
# --------------------------------------------------------------------------------------
@functools.partial(jax.jit, static_argnames=("tm", "ek_tile", "use_bf16"))
def regression_output(x, orig_value, params, *, tm=512, ek_tile=None, use_bf16=False):
    """x: (B, S, E), orig_value: (B, S, 1) -> (B, S, 1) = orig_value + ffn(x)."""
    B, S, E = x.shape
    M = B * S
    w1, b1, gamma, beta, w2, b2 = params
    W = w1.shape[1]

    out_dtype = jnp.promote_types(x.dtype, orig_value.dtype)

    x2 = x.reshape(M, E)
    orig2 = orig_value.reshape(M, 1).astype(out_dtype)
    if use_bf16:
        # Halves the dominant HBM stream and avoids multi-pass f32 MXU mode;
        # accumulation / LN / projection math stays f32.
        x2 = x2.astype(jnp.bfloat16)
        w1 = w1.astype(jnp.bfloat16)

    # Fused-epilogue parameters: stacked (2, W) = [b1 ; gamma*w2], scalar = beta.w2 + b2.
    b1f = b1.reshape(1, W).astype(jnp.float32)
    gw2 = (gamma.reshape(1, W).astype(jnp.float32)
           * w2.reshape(1, W).astype(jnp.float32))
    vecs = jnp.concatenate([b1f, gw2], axis=0)                      # (2, W) f32
    const = (jnp.sum(beta.reshape(-1).astype(jnp.float32)
                     * w2.reshape(-1).astype(jnp.float32))
             + b2.reshape(()).astype(jnp.float32)).reshape(1)       # (1,) f32, SMEM

    # --- VMEM budget & tile selection -------------------------------------------------
    xbytes = x2.dtype.itemsize
    wbytes = w1.dtype.itemsize
    obytes = jnp.dtype(out_dtype).itemsize
    try:
        phys_vmem = int(pltpu.get_tpu_info().vmem_capacity_bytes)
    except Exception:
        phys_vmem = 64 * 1024 * 1024            # v7x-safe fallback
    budget = int(0.55 * phys_vmem)

    tm_eff, tk, ksplit = _select_tiling(M, E, W, xbytes, wbytes, obytes,
                                        budget, tm, ek_tile)

    # Re-balance row tiles: near-equal sizes; prefer an even tile count when there is
    # enough work (v7x megacore balance; negligible cost on single-TC chips).
    n_tiles = _cdiv(M, tm_eff)
    if n_tiles > 1 and (n_tiles % 2) and M >= 1024:
        n_tiles += 1
    tm_eff = max(8, _round_up(_cdiv(M, n_tiles), 8))
    n_tiles = _cdiv(M, tm_eff)

    footprint = _footprint_bytes(tm_eff, tk, W, xbytes, wbytes, obytes,
                                 2 if ksplit else 1, ksplit)
    vmem_limit = int(min(max(2 * footprint, 32 * 1024 * 1024), int(0.9 * phys_vmem)))

    cost = pl.CostEstimate(
        flops=int(2 * M * E * W + 8 * M * W + 4 * M),
        transcendentals=int(M),
        bytes_accessed=int(M * E * xbytes + E * W * wbytes + 2 * W * 4 + 4
                           + 2 * M * obytes),
    )

    # --- specs / grid ------------------------------------------------------------------
    if not ksplit:
        grid = (n_tiles,)
        in_specs = [
            _bspec((tm_eff, E), lambda i: (i, 0)),                   # x tile
            _bspec((E, W), lambda i: (0, 0), n_buf=1),               # w1 (grid-invariant)
            _bspec((2, W), lambda i: (0, 0), n_buf=1),               # [b1 ; gamma*w2]
            pl.BlockSpec(memory_space=pltpu.MemorySpace.SMEM),       # scalar const
            _bspec((tm_eff, 1), lambda i: (i, 0)),                   # orig tile
        ]
        out_specs = pl.BlockSpec((tm_eff, 1), lambda i: (i, 0))
        scratch = []
        kernel = _reg_out_kernel
        dims = ("parallel",)
    else:
        nk = E // tk
        grid = (n_tiles, nk)
        in_specs = [
            _bspec((tm_eff, tk), lambda i, k: (i, k)),               # x tile
            _bspec((tk, W), lambda i, k: (k, 0)),                    # w1 K-slice
            _bspec((2, W), lambda i, k: (0, 0), n_buf=1),            # [b1 ; gamma*w2]
            pl.BlockSpec(memory_space=pltpu.MemorySpace.SMEM),       # scalar const
            _bspec((tm_eff, 1), lambda i, k: (i, 0)),                # orig tile
        ]
        out_specs = pl.BlockSpec((tm_eff, 1), lambda i, k: (i, 0))
        scratch = [pltpu.VMEM((tm_eff, W), jnp.float32)]
        kernel = _reg_out_kernel_ksplit
        dims = ("parallel", "arbitrary")

    out2 = pl.pallas_call(
        kernel,
        out_shape=jax.ShapeDtypeStruct((M, 1), out_dtype),
        grid_spec=pltpu.PrefetchScalarGridSpec(
            num_scalar_prefetch=0,
            grid=grid,
            in_specs=in_specs,
            out_specs=out_specs,
            scratch_shapes=scratch,
        ),
        compiler_params=pltpu.CompilerParams(
            dimension_semantics=dims,
            vmem_limit_bytes=vmem_limit,
        ),
        cost_estimate=cost,
        input_output_aliases={4: 0},   # reuse the orig_value buffer for the output
    )(x2, w1, vecs, const, orig2)

    return out2.reshape(B, S, 1)


# --------------------------------------------------------------------------------------
# Params / reference
# --------------------------------------------------------------------------------------
def init_params(key, embed_dim, width, dtype=jnp.float32):
    """Deterministic synthetic params matching ffn(embed_dim, 1, width, ReLU, dropout)."""
    k1, k2, k3, k4 = jax.random.split(key, 4)
    # torch stores Linear weight as (out, in); we keep (in, out) for the kernel.
    w1 = jax.random.normal(k1, (embed_dim, width), dtype) * (1.0 / embed_dim ** 0.5)
    b1 = jax.random.normal(k2, (1, width), dtype) * 0.01
    gamma = jnp.ones((1, width), dtype)
    beta = jnp.zeros((1, width), dtype)
    w2 = jax.random.normal(k3, (width, 1), dtype) * (1.0 / width ** 0.5)
    b2 = jax.random.normal(k4, (1, 1), dtype) * 0.01
    return (w1, b1, gamma, beta, w2, b2)


def regression_output_ref(x, orig_value, params):
    """Pure-JAX reference of the forward pass (f32 math, like the kernel)."""
    w1, b1, gamma, beta, w2, b2 = params
    h = jnp.dot(x.astype(jnp.float32), w1.astype(jnp.float32)) + b1.astype(jnp.float32)
    h = jnp.maximum(h, 0.0)
    mean = jnp.mean(h, axis=-1, keepdims=True)
    var = jnp.mean((h - mean) ** 2, axis=-1, keepdims=True)
    h = (h - mean) * jax.lax.rsqrt(var + LN_EPS)
    h = h * gamma.astype(jnp.float32) + beta.astype(jnp.float32)
    nn_out = h @ w2.astype(jnp.float32) + b2.astype(jnp.float32)
    return (orig_value.astype(jnp.float32) + nn_out).astype(
        jnp.promote_types(x.dtype, orig_value.dtype))


if __name__ == "__main__":
    key = jax.random.PRNGKey(0)
    kx, ko, kp, kx2, ko2, kx3, ko3 = jax.random.split(key, 7)

    # 1) Small case consistent with the module: batch=2, seq=8, embed_dim=32, width=64.
    B, S, E, W = 2, 8, 32, 64
    x = jax.random.normal(kx, (B, S, E), jnp.float32)
    orig_value = jax.random.normal(ko, (B, S, 1), jnp.float32)
    params = init_params(kp, E, W)

    out = jax.block_until_ready(regression_output(x, orig_value, params))
    ref = regression_output_ref(x, orig_value, params)
    assert out.shape == (B, S, 1)
    assert jnp.allclose(out, ref, atol=1e-4, rtol=1e-4)

    # 2) Multi-tile case exercising the VMEM-aware / re-balanced row tiling and a
    #    ragged last tile (M = 2100).
    B2, S2, E2, W2 = 3, 700, 128, 256
    x_l = jax.random.normal(kx2, (B2, S2, E2), jnp.float32)
    orig_l = jax.random.normal(ko2, (B2, S2, 1), jnp.float32)
    params_l = init_params(kp, E2, W2)

    out_l = jax.block_until_ready(regression_output(x_l, orig_l, params_l))
    ref_l = regression_output_ref(x_l, orig_l, params_l)
    assert out_l.shape == (B2, S2, 1)
    assert jnp.allclose(out_l, ref_l, atol=2e-4, rtol=2e-4)

    # 3) Force the K-split (reduction-axis) path on a small shape to exercise it.
    B3, S3, E3, W3 = 2, 64, 256, 128
    x_k = jax.random.normal(kx3, (B3, S3, E3), jnp.float32)
    orig_k = jax.random.normal(ko3, (B3, S3, 1), jnp.float32)
    params_k = init_params(kp, E3, W3)

    out_k = jax.block_until_ready(
        regression_output(x_k, orig_k, params_k, ek_tile=128))
    ref_k = regression_output_ref(x_k, orig_k, params_k)
    assert out_k.shape == (B3, S3, 1)
    assert jnp.allclose(out_k, ref_k, atol=2e-4, rtol=2e-4)

    print("KERNEL_OK")
</pallas_src>

<mosaic_0001>
module attributes {stable_mosaic.version = 11 : i64} {
  func.func @_reg_out_kernel(%arg0: i32, %arg1: memref<16x32xf32, #tpu.memory_space<vmem>>, %arg2: memref<32x64xf32, #tpu.memory_space<vmem>>, %arg3: memref<2x64xf32, #tpu.memory_space<vmem>>, %arg4: memref<1xf32, #tpu.memory_space<smem>>, %arg5: memref<16x1xf32, #tpu.memory_space<vmem>>, %arg6: memref<16x1xf32, #tpu.memory_space<vmem>>) attributes {dimension_semantics = [#tpu.dimension_semantics<parallel>], iteration_bounds = array<i64: 1>, scalar_prefetch = 0 : i64, scratch_operands = 0 : i64, tpu.core_type = #tpu.core_type<tc>, window_params = [{transform_indices = @transform_0, window_bounds = array<i64: 16, 32>}, {pipeline_mode = #tpu.pipeline_mode<synchronous>, transform_indices = @transform_1, window_bounds = array<i64: 32, 64>}, {pipeline_mode = #tpu.pipeline_mode<synchronous>, transform_indices = @transform_2, window_bounds = array<i64: 2, 64>}, {transform_indices = @transform_3, window_bounds = array<i64: 1>}, {transform_indices = @transform_4, window_bounds = array<i64: 16, 1>}, {transform_indices = @transform_5, window_bounds = array<i64: 16, 1>}]} {
    %c0 = arith.constant 0 : index
    %c0_0 = arith.constant 0 : index
    %0 = vector.load %arg1[%c0, %c0_0] : memref<16x32xf32, #tpu.memory_space<vmem>>, vector<16x32xf32>
    %c0_1 = arith.constant 0 : index
    %c0_2 = arith.constant 0 : index
    %1 = vector.load %arg2[%c0_1, %c0_2] : memref<32x64xf32, #tpu.memory_space<vmem>>, vector<32x64xf32>
    %cst = arith.constant dense<0.000000e+00> : vector<16x64xf32>
    %2 = tpu.matmul %0, %1, %cst {dimension_numbers = #tpu.dot_dimension_numbers<[1], [0], [0], [1], [0, 0, 1, 1], [], []>} : vector<16x32xf32>, vector<32x64xf32>, vector<16x64xf32> -> vector<16x64xf32>
    %c0_3 = arith.constant 0 : index
    %c0_4 = arith.constant 0 : index
    %3 = vector.load %arg3[%c0_3, %c0_4] : memref<2x64xf32, #tpu.memory_space<vmem>>, vector<1x64xf32>
    %4 = vector.broadcast %3 : vector<1x64xf32> to vector<16x64xf32>
    %5 = arith.addf %2, %4 : vector<16x64xf32>
    %cst_5 = arith.constant 0.000000e+00 : f32
    %6 = vector.broadcast %cst_5 : f32 to vector<16x64xf32>
    %7 = arith.maximumf %5, %6 : vector<16x64xf32>
    %cst_6 = arith.constant dense<0.000000e+00> : vector<16xf32>
    %8 = vector.multi_reduction <add>, %7, %cst_6 [1] : vector<16x64xf32> to vector<16xf32>
    %9 = vector.shape_cast %8 : vector<16xf32> to vector<16x1xf32>
    %cst_7 = arith.constant 6.400000e+01 : f32
    %10 = vector.broadcast %cst_7 : f32 to vector<16x1xf32>
    %11 = arith.divf %9, %10 : vector<16x1xf32>
    %12 = vector.broadcast %11 : vector<16x1xf32> to vector<16x64xf32>
    %13 = arith.subf %7, %12 : vector<16x64xf32>
    %14 = arith.mulf %13, %13 : vector<16x64xf32>
    %cst_8 = arith.constant dense<0.000000e+00> : vector<16xf32>
    %15 = vector.multi_reduction <add>, %14, %cst_8 [1] : vector<16x64xf32> to vector<16xf32>
    %16 = vector.shape_cast %15 : vector<16xf32> to vector<16x1xf32>
    %cst_9 = arith.constant 6.400000e+01 : f32
    %17 = vector.broadcast %cst_9 : f32 to vector<16x1xf32>
    %18 = arith.divf %16, %17 : vector<16x1xf32>
    %cst_10 = arith.constant 9.99999974E-6 : f32
    %19 = vector.broadcast %cst_10 : f32 to vector<16x1xf32>
    %20 = arith.addf %18, %19 : vector<16x1xf32>
    %21 = math.rsqrt %20 : vector<16x1xf32>
    %c1 = arith.constant 1 : index
    %c0_11 = arith.constant 0 : index
    %22 = vector.load %arg3[%c1, %c0_11] : memref<2x64xf32, #tpu.memory_space<vmem>>, vector<1x64xf32>
    %23 = vector.broadcast %22 : vector<1x64xf32> to vector<16x64xf32>
    %24 = arith.mulf %13, %23 : vector<16x64xf32>
    %cst_12 = arith.constant dense<0.000000e+00> : vector<16xf32>
    %25 = vector.multi_reduction <add>, %24, %cst_12 [1] : vector<16x64xf32> to vector<16xf32>
    %26 = vector.shape_cast %25 : vector<16xf32> to vector<16x1xf32>
    %27 = arith.mulf %21, %26 : vector<16x1xf32>
    %c0_13 = arith.constant 0 : index
    %28 = memref.load %arg4[%c0_13] : memref<1xf32, #tpu.memory_space<smem>>
    %29 = vector.broadcast %28 : f32 to vector<16x1xf32>
    %30 = arith.addf %27, %29 : vector<16x1xf32>
    %c0_14 = arith.constant 0 : index
    %c0_15 = arith.constant 0 : index
    %31 = vector.load %arg5[%c0_14, %c0_15] : memref<16x1xf32, #tpu.memory_space<vmem>>, vector<16x1xf32>
    %32 = arith.addf %31, %30 : vector<16x1xf32>
    %c0_16 = arith.constant 0 : index
    %c0_17 = arith.constant 0 : index
    %33 = vector.load %arg6[%c0_16, %c0_17] : memref<16x1xf32, #tpu.memory_space<vmem>>, vector<16x1xf32>
    tpu.vector_store %arg6[%c0_16, %c0_17], %32 {strides = array<i32>} : memref<16x1xf32, #tpu.memory_space<vmem>>, vector<16x1xf32>,
    return
  }
  func.func @transform_0(%arg0: i32) -> (i32, i32) {
    %c0_i32 = arith.constant 0 : i32
    %c0_i32_0 = arith.constant 0 : i32
    return %arg0, %c0_i32 : i32, i32
  }
  func.func @transform_1(%arg0: i32) -> (i32, i32) {
    %c0_i32 = arith.constant 0 : i32
    %c0_i32_0 = arith.constant 0 : i32
    %c0_i32_1 = arith.constant 0 : i32
    return %c0_i32, %c0_i32_0 : i32, i32
  }
  func.func @transform_2(%arg0: i32) -> (i32, i32) {
    %c0_i32 = arith.constant 0 : i32
    %c0_i32_0 = arith.constant 0 : i32
    %c0_i32_1 = arith.constant 0 : i32
    return %c0_i32, %c0_i32_0 : i32, i32
  }
  func.func @transform_3(%arg0: i32) -> i32 {
    %c0_i32 = arith.constant 0 : i32
    %c0_i32_0 = arith.constant 0 : i32
    return %c0_i32 : i32
  }
  func.func @transform_4(%arg0: i32) -> (i32, i32) {
    %c0_i32 = arith.constant 0 : i32
    %c0_i32_0 = arith.constant 0 : i32
    return %arg0, %c0_i32 : i32, i32
  }
  func.func @transform_5(%arg0: i32) -> (i32, i32) {
    %c0_i32 = arith.constant 0 : i32
    %c0_i32_0 = arith.constant 0 : i32
    return %arg0, %c0_i32 : i32, i32
  }
}

</mosaic_0001>

<llo_original>
// kernel: regression_output.1
$region0: #{regression_output.1}
  #allocation0 [shape = 'u32[]', space=smem, size = 0x4, offset = 0x4, fixed_abs, tag = 'smem constant byte address 0x4 - core index']
  #allocation1 [shape = 'u32[144,128]{1,0:T(1,128)}', space=vmem, size = 0x12000, scoped, tag = 'internal scratch']
  #allocation2 [shape = 'f32[1]{0:T(128)S(6)}', space=smem, size = 0x200, scoped, tag = 'scoped memory for regression_output.1']
  %s0 = inlined_call_operand.vmem [shape: f32[16,32], index: 0, kind: input, shape index: {}]
  %s1 = inlined_call_operand.vmem [shape: f32[32,64], index: 1, kind: input, shape index: {}]
  %s2 = inlined_call_operand.vmem [shape: f32[2,64], index: 2, kind: input, shape index: {}]
  %s3 = inlined_call_operand.<no memory space> [shape: f32[1], index: 3, kind: input, shape index: {}]
  %s4 = inlined_call_operand.vmem [shape: f32[16,1], index: 4, kind: input, shape index: {}, may-alias: {4,5}]
  %s5 = inlined_call_operand.vmem [shape: f32[16,1], index: 5, kind: output, shape index: {}, may-alias: {4,5}]
  %s6 = sld [smem:[#allocation0]]
  $region30: #{regression_output.1} parent=0
    _
  %s8 = ssub.s32 1, %s6
  %s9 = scalar_select 0, %s8, %s6
  %10 = sst [smem:[#allocation2]] %s3
  // Predicated region
  $region2: #{regression_output.1} parent=0 // pred_check
    _
  $region3: #{regression_output.1} parent=0 // pred_check_branch
    %12 = sbr.rel (0) target = $region5
  $region4: #{regression_output.1} parent=0 // pred_region
    _
  $region5: #{regression_output.1} parent=0 // pred_fallthru
    _
  // Predicated region
  $region6: #{regression_output.1} parent=0 // pred_check
    _
  $region7: #{regression_output.1} parent=0 // pred_check_branch
    %14 = sbr.rel (0) target = $region9
  $region8: #{regression_output.1} parent=0 // pred_region
    _
  $region9: #{regression_output.1} parent=0 // pred_fallthru
    _
  // Predicated region
  $region10: #{regression_output.1} parent=0 // pred_check
    _
  $region11: #{regression_output.1} parent=0 // pred_check_branch
    %16 = sbr.rel (0) target = $region13
  $region12: #{regression_output.1} parent=0 // pred_region
    _
  $region13: #{regression_output.1} parent=0 // pred_fallthru
    _
  // Predicated region
  $region14: #{regression_output.1} parent=0 // pred_check
    _
  $region15: #{regression_output.1} parent=0 // pred_check_branch
    %18 = sbr.rel (0) target = $region17
  $region16: #{regression_output.1} parent=0 // pred_region
    _
  $region17: #{regression_output.1} parent=0 // pred_fallthru
    _
  // Predicated region
  $region18: #{regression_output.1} parent=0 // pred_check
    _
  $region19: #{regression_output.1} parent=0 // pred_check_branch
    %20 = sbr.rel (0) target = $region21
  $region20: #{regression_output.1} parent=0 // pred_region
    _
  $region21: #{regression_output.1} parent=0 // pred_fallthru
    _
  %v21 = vld [vmem:[%s0] sm:$0xff]
  %v22 = vld [vmem:[%s0 + $0x8] sm:$0xff]
  %v23 = vld [vmem:[%s1] sm:$0xff]
  %v24 = vld [vmem:[%s1 + $0x8] sm:$0xff]
  %v25 = vld [vmem:[%s1 + $0x10] sm:$0xff]
  %v26 = vld [vmem:[%s1 + $0x18] sm:$0xff]
  %v27 = vld [vmem:[%s2] sm:$0x1]
  %v28 = vlaneseq
  %v29 = vshrl.u32 %v28, 7
  %v30 = vsub.s32 0, %v29
  %v31 = vrot.slane %v27, %v30
  %vm32 = vcmask 261120
  %v34 = vsel %vm32, %v21, 0
  %v37 = vsel %vm32, %v22, 0
  %39 = vmatprep.subr.mxu0 0.0
  %40 = vmatpush1.msra.mxu0 0.0
  %41 = vmatprep.subr.mxu0 0.0
  %42 = vmatpush1.msra.mxu0 0.0
  %43 = vmatprep.subr.mxu0 0.0
  %44 = vmatpush1.msra.mxu0 0.0
  %45 = vmatprep.subr.mxu0 0.0
  %46 = vmatpush1.msra.mxu0 0.0
  %47 = vmatprep.subr.mxu0 0.0
  %48 = vmatpush1.msra.mxu0 0.0
  %49 = vmatprep.subr.mxu0 0.0
  %50 = vmatpush1.msra.mxu0 0.0
  %51 = vmatprep.subr.mxu0 0.0
  %52 = vmatpush1.msra.mxu0 0.0
  %53 = vmatprep.subr.mxu0 0.0
  %54 = vmatpush1.msra.mxu0 0.0
  %55 = vmatprep.subr.mxu0 0.0
  %56 = vmatpush1.msra.mxu0 0.0
  %57 = vmatprep.subr.mxu0 0.0
  %58 = vmatpush1.msra.mxu0 0.0
  %59 = vmatprep.subr.mxu0 0.0
  %60 = vmatpush1.msra.mxu0 0.0
  %61 = vmatprep.subr.mxu0 0.0
  %62 = vmatpush1.msra.mxu0 0.0
  %63 = vmatprep.subr.mxu0 0.0
  %64 = vmatpush1.msra.mxu0 %v26
  %65 = vmatprep.subr.mxu0 0.0
  %66 = vmatpush1.msra.mxu0 %v25
  %67 = vmatprep.subr.mxu0 0.0
  %68 = vmatpush1.msra.mxu0 %v24
  %69 = vmatprep.subr.mxu0 0.0
  %70 = vmatpush1.msra.mxu0 %v23
  %71 = vmatprep.subr.mxu0 0.0
  %72 = vmatpush2.msra.mxu0 0.0
  %73 = vmatprep.subr.mxu0 0.0
  %74 = vmatpush2.msra.mxu0 0.0
  %75 = vmatprep.subr.mxu0 0.0
  %76 = vmatpush2.msra.mxu0 0.0
  %77 = vmatprep.subr.mxu0 0.0
  %78 = vmatpush2.msra.mxu0 0.0
  %79 = vmatprep.subr.mxu0 0.0
  %80 = vmatpush2.msra.mxu0 0.0
  %81 = vmatprep.subr.mxu0 0.0
  %82 = vmatpush2.msra.mxu0 0.0
  %83 = vmatprep.subr.mxu0 0.0
  %84 = vmatpush2.msra.mxu0 0.0
  %85 = vmatprep.subr.mxu0 0.0
  %86 = vmatpush2.msra.mxu0 0.0
  %87 = vmatprep.subr.mxu0 0.0
  %88 = vmatpush2.msra.mxu0 0.0
  %89 = vmatprep.subr.mxu0 0.0
  %90 = vmatpush2.msra.mxu0 0.0
  %91 = vmatprep.subr.mxu0 0.0
  %92 = vmatpush2.msra.mxu0 0.0
  %93 = vmatprep.subr.mxu0 0.0
  %94 = vmatpush2.msra.mxu0 0.0
  %95 = vmatprep.subr.mxu0 0.0
  %96 = vmatpush2.msra.mxu0 0.0
  %97 = vmatprep.subr.mxu0 0.0
  %98 = vmatpush2.msra.mxu0 0.0
  %99 = vmatprep.subr.mxu0 0.0
  %100 = vmatpush2.msra.mxu0 0.0
  %101 = vmatprep.subr.mxu0 0.0
  %102 = vmatpush2.msra.mxu0 0.0
  %103 = vmatprep.mubr.f32.mxu0 0.0
  %104 = vmatmul.mubr.f32.gmra.mxu0 %v34
  %v105 = vpop.f32.mrf.mxu0
  %v106 = vadd.f32 %v31, %v105
  %v107 = vpop.f32.mrf.mxu0
  %108 = vmatprep.mubr.f32.mxu0 0.0
  %109 = vmatmul.mubr.f32.gmra.mxu0 %v37
  %v110 = vpop.f32.mrf.mxu0
  %v111 = vadd.f32 %v31, %v110
  %v112 = vpop.f32.mrf.mxu0
  %113 = vdwg.mxu0
  %v114 = vmax.f32 %v106, 0.0
  %v115 = vmax.f32 %v111, 0.0
  %vm116 = vcmask 523264
  %v117 = vsel %vm116, %v114, 0.0
  %118 = vadd.xlane.f32.xlu0 %v117
  %v119 = vpop.xlane.xlu0 %118
  %v120 = vsel %vm116, %v115, 0.0
  %121 = vadd.xlane.f32.xlu0 %v120
  %v122 = vpop.xlane.xlu0 %121
  %v123 = vrcp.pop 64.0
  %v124 = vmul.f32 %v119, %v123
  %v125 = vmul.f32 %v122, %v123
  %v126 = vsub.f32 %v114, %v124
  %v127 = vsub.f32 %v115, %v125
  %v128 = vmul.f32 %v126, %v126
  %v129 = vmul.f32 %v127, %v127
  %v130 = vsel %vm116, %v128, 0.0
  %131 = vadd.xlane.f32.xlu0 %v130
  %v132 = vpop.xlane.xlu0 %131
  %v133 = vsel %vm116, %v129, 0.0
  %134 = vadd.xlane.f32.xlu0 %v133
  %v135 = vpop.xlane.xlu0 %134
  %v136 = vmul.f32 %v132, %v123
  %v137 = vmul.f32 %v135, %v123
  %v138 = vadd.f32 %v136, 1e-05
  %v139 = vadd.f32 %v137, 1e-05
  %v140 = vrsqrt.pop %v138
  %v141 = vrsqrt.pop %v139
  %v142 = vld [vmem:[%s2 + $0x1] sm:$0x1]
  %v143 = vlaneseq
  %v144 = vshrl.u32 %v143, 7
  %v145 = vsub.s32 0, %v144
  %v146 = vrot.slane %v142, %v145
  %v147 = vmul.f32 %v126, %v146
  %v148 = vmul.f32 %v127, %v146
  %v149 = vsel %vm116, %v147, 0.0
  %150 = vadd.xlane.f32.xlu0 %v149
  %v151 = vpop.xlane.xlu0 %150
  %v152 = vsel %vm116, %v148, 0.0
  %153 = vadd.xlane.f32.xlu0 %v152
  %v154 = vpop.xlane.xlu0 %153
  %v155 = vmul.f32 %v140, %v151
  %v156 = vmul.f32 %v141, %v154
  %s157 = sld [smem:[#allocation2]]
  %v158 = vstv %s157
  %v159 = vadd.f32 %v155, %v158
  %v160 = vadd.f32 %v156, %v158
  %v161 = vld [vmem:[%s4] sm:$0xff]
  %v162 = vld [vmem:[%s4 + $0x8] sm:$0xff]
  %v163 = vadd.f32 %v161, %v159
  %v164 = vadd.f32 %v162, %v160
  %vm165 = vcmask 7168
  %166 = vst.msk [vmem:[%s5] sm:$0xff] %vm165, %v163
  %167 = vst.msk [vmem:[%s5 + $0x8] sm:$0xff] %vm165, %v164
  // Predicated region
  $region22: #{regression_output.1} parent=0 // pred_check
    _
  $region23: #{regression_output.1} parent=0 // pred_check_branch
    %169 = sbr.rel (0) target = $region25
  $region24: #{regression_output.1} parent=0 // pred_region
    _
  $region25: #{regression_output.1} parent=0 // pred_fallthru
    _
  // Predicated region
  $region26: #{regression_output.1} parent=0 // pred_check
    _
  $region27: #{regression_output.1} parent=0 // pred_check_branch
    %171 = sbr.rel (0) target = $region29
  $region28: #{regression_output.1} parent=0 // pred_region
    _
  $region29: #{regression_output.1} parent=0 // pred_fallthru
    _

</llo_original>
